<compile_context>
chip_gen: v7x
topology: tpu7x:2x2x1
jax: 0.10.0
libtpu: 0.0.40
codegen_flags: <defaults>
</compile_context>

<pallas_src>
import functools

import jax
import jax.numpy as jnp
from jax import lax
from jax.experimental import pallas as pl
from jax.experimental.pallas import tpu as pltpu


# ---------------------------------------------------------------------------
# Kernel
# ---------------------------------------------------------------------------
def _embed_kernel(w_ref, p_ref, pb_ref, o_ref):
    # (C_out, K) @ (K, n_tile) on the MXU, f32 accumulation.  Bias + position
    # embeddings arrive pre-fused in pb_ref.  Lane axis = n_tile (dense).
    acc = jnp.dot(w_ref[...], p_ref[...], preferred_element_type=jnp.float32)
    o_ref[...] = (acc + pb_ref[...]).astype(o_ref.dtype)


# ---------------------------------------------------------------------------
# Tile selection
# ---------------------------------------------------------------------------
_TARGET_COLS = 2048          # per-step column tile target (multiple of 128)
_VMEM_BUDGET = 8 * 1024 * 1024   # keep well under v5e's 16 MiB scoped default


def _round_up(a, b):
    return ((a + b - 1) // b) * b


def _select_col_tile(N, K, C_out, patch_itemsize):
    """Pick the per-step column tile (lane width) and the padded N."""
    def vmem_bytes(nt):
        k_rows = _round_up(K, 16)      # sublane padding under the bf16 (16,128) tile
        c_rows = _round_up(C_out, 8)   # f32 (8,128) tile
        per_step = (k_rows * nt * patch_itemsize   # patches block
                    + c_rows * nt * 4               # posb block (f32)
                    + c_rows * nt * 4)              # out block (f32)
        w_res = _round_up(C_out, 16) * _round_up(K, 128) * patch_itemsize
        return 2 * (per_step + w_res)               # double buffering

    if N <= _TARGET_COLS and (N <= 128 or vmem_bytes(N) <= _VMEM_BUDGET):
        return N, N                                 # one block per batch (full extent)
    nt = min(_TARGET_COLS, _round_up(N, 128))
    while nt > 128 and vmem_bytes(nt) > _VMEM_BUDGET:
        nt = max(128, (nt // 2) // 128 * 128)       # shrink, stay a multiple of 128
    return nt, _round_up(N, nt)


# ---------------------------------------------------------------------------
# Forward pass
# ---------------------------------------------------------------------------
def channel_transformer_embed(x, weight, bias, pos_emb, *, patch_size, stride,
                              matmul_dtype=jnp.bfloat16, use_pallas=None):
    """x: (B, C_in, H, W) NCHW float32 -- same convention as the PyTorch module."""
    if x is None:
        return None

    B, C_in, H, W = x.shape
    C_out = weight.shape[0]
    kH = kW = patch_size
    pad = patch_size // 2
    H_out = (H + 2 * pad - kH) // stride + 1
    W_out = (W + 2 * pad - kW) // stride + 1
    N = H_out * W_out
    K = C_in * kH * kW

    # Latent assumption of the PyTorch module made explicit: the pos-emb last
    # dim (in_channels used for the Parameter) must equal C_out for the add.
    assert pos_emb.shape == (1, N, C_out), (
        f"position_embeddings shape {pos_emb.shape} must be (1, {N}, {C_out})")

    # Tiny problems: the pallas launch + minimum grid overhead exceeds the
    # actual work; let XLA's fused conv handle them (override with use_pallas).
    if use_pallas is None:
        use_pallas = (B * N) >= 4096
    if not use_pallas:
        y = lax.conv_general_dilated(
            x, weight, (stride, stride), [(pad, pad), (pad, pad)],
            dimension_numbers=("NCHW", "OIHW", "NCHW"))
        y = y + bias[None, :, None, None]
        return y.reshape(B, C_out, N).transpose(0, 2, 1) + pos_emb

    # --- im2col, built directly in the kernel's (B, K, N) layout -------------
    x_pad = jnp.pad(x, ((0, 0), (0, 0), (pad, pad), (pad, pad)))
    taps = [x_pad[:, :,
                  kh:kh + stride * (H_out - 1) + 1:stride,
                  kw:kw + stride * (W_out - 1) + 1:stride]
            for kh in range(kH) for kw in range(kW)]
    # (B, C_in, kH*kW, H_out, W_out) -> (B, K, N); K ordered (ci, kh, kw) so it
    # matches weight.reshape(C_out, C_in*kH*kW).  No explicit transpose.
    patches = jnp.stack(taps, axis=2).reshape(B, K, N).astype(matmul_dtype)
    w_mat = weight.reshape(C_out, K).astype(matmul_dtype)
    # Fold conv bias into the position embeddings; kept (C_out, N), NOT tiled
    # over batch -- the index_map below reuses the same block for every b.
    posb = (pos_emb.reshape(N, C_out).astype(jnp.float32)
            + bias.astype(jnp.float32)[None, :]).T                 # (C_out, N)

    # --- tiling ---------------------------------------------------------------
    itemsize = jnp.dtype(matmul_dtype).itemsize
    n_tile, N_pad = _select_col_tile(N, K, C_out, itemsize)
    if N_pad != N:
        patches = jnp.pad(patches, ((0, 0), (0, 0), (0, N_pad - N)))
        posb = jnp.pad(posb, ((0, 0), (0, N_pad - N)))
    grid = (B, N_pad // n_tile)

    cost = pl.CostEstimate(
        flops=2 * B * N_pad * K * C_out,
        transcendentals=0,
        bytes_accessed=(patches.size * itemsize + w_mat.size * itemsize
                        + posb.size * 4 + B * C_out * N_pad * 4),
    )

    out = pl.pallas_call(
        _embed_kernel,
        out_shape=jax.ShapeDtypeStruct((B, C_out, N_pad), x.dtype),
        grid_spec=pltpu.PrefetchScalarGridSpec(
            num_scalar_prefetch=0,
            grid=grid,
            in_specs=[
                pl.BlockSpec((C_out, K), lambda b, j: (0, 0)),          # weight (resident)
                pl.BlockSpec((None, K, n_tile), lambda b, j: (b, 0, j)),  # patch columns
                pl.BlockSpec((C_out, n_tile), lambda b, j: (0, j)),     # pos+bias (no batch tile)
            ],
            out_specs=pl.BlockSpec((None, C_out, n_tile), lambda b, j: (b, 0, j)),
        ),
        compiler_params=pltpu.CompilerParams(
            dimension_semantics=("parallel", "parallel")),
        cost_estimate=cost,
    )(w_mat, patches, posb)

    if N_pad != N:
        out = out[:, :, :N]
    # (B, C_out, N) -> (B, N, C_out) in XLA glue.
    # TODO(synk): nn.Dropout is identity in eval mode; training-mode stochastic
    # dropout is not implemented.
    return jnp.transpose(out, (0, 2, 1))


# ---------------------------------------------------------------------------
# Demo / self-check
# ---------------------------------------------------------------------------
if __name__ == "__main__":
    # Shapes implied by the module: img_size=16, patch_size=3, stride_size=2,
    # in_channels=4, channel_num=4 (must equal in_channels for the pos-emb add).
    B, C_in, H, W = 2, 4, 16, 16
    C_out = 4
    patch_size, stride = 3, 2
    N = (H // stride) * (W // stride)   # num_patches = 64

    key = jax.random.PRNGKey(0)
    kx, kw, kb, kp = jax.random.split(key, 4)
    x = jax.random.normal(kx, (B, C_in, H, W), jnp.float32)
    weight = jax.random.normal(kw, (C_out, C_in, patch_size, patch_size), jnp.float32) * 0.1
    bias = jax.random.normal(kb, (C_out,), jnp.float32) * 0.1
    # torch __init__ uses zeros; a small non-zero value exercises the add path.
    pos_emb = jax.random.normal(kp, (1, N, C_in), jnp.float32) * 0.02

    fwd = jax.jit(functools.partial(channel_transformer_embed,
                                    patch_size=patch_size, stride=stride,
                                    use_pallas=True))   # force Pallas at demo size
    out = jax.block_until_ready(fwd(x, weight, bias, pos_emb))

    # Full-precision reference of the PyTorch eval-mode forward pass.
    ref = lax.conv_general_dilated(
        x, weight, (stride, stride),
        [(patch_size // 2, patch_size // 2)] * 2,
        dimension_numbers=("NCHW", "OIHW", "NCHW")) + bias[None, :, None, None]
    ref = ref.reshape(B, C_out, -1).transpose(0, 2, 1) + pos_emb

    assert out.shape == (B, N, C_out), out.shape
    max_err = float(jnp.max(jnp.abs(out - ref)))
    assert max_err < 3e-2, f"max abs err vs f32 reference: {max_err}"
    print("KERNEL_OK")
</pallas_src>

<mosaic_0001>
module attributes {stable_mosaic.version = 11 : i64} {
  func.func @_embed_kernel(%arg0: i32, %arg1: i32, %arg2: memref<4x36xbf16, #tpu.memory_space<vmem>>, %arg3: memref<1x36x64xbf16, #tpu.memory_space<vmem>>, %arg4: memref<4x64xf32, #tpu.memory_space<vmem>>, %arg5: memref<1x4x64xf32, #tpu.memory_space<vmem>>) attributes {dimension_semantics = [#tpu.dimension_semantics<parallel>, #tpu.dimension_semantics<parallel>], iteration_bounds = array<i64: 2, 1>, scalar_prefetch = 0 : i64, scratch_operands = 0 : i64, tpu.core_type = #tpu.core_type<tc>, window_params = [{pipeline_mode = #tpu.pipeline_mode<synchronous>, transform_indices = @transform_0, window_bounds = array<i64: 4, 36>}, {transform_indices = @transform_1, window_bounds = array<i64: 1, 36, 64>}, {transform_indices = @transform_2, window_bounds = array<i64: 4, 64>}, {transform_indices = @transform_3, window_bounds = array<i64: 1, 4, 64>}]} {
    %c0 = arith.constant 0 : index
    %c0_0 = arith.constant 0 : index
    %0 = vector.load %arg2[%c0, %c0_0] : memref<4x36xbf16, #tpu.memory_space<vmem>>, vector<4x36xbf16>
    %c0_1 = arith.constant 0 : index
    %c0_2 = arith.constant 0 : index
    %c0_3 = arith.constant 0 : index
    %1 = vector.load %arg3[%c0_1, %c0_2, %c0_3] : memref<1x36x64xbf16, #tpu.memory_space<vmem>>, vector<1x36x64xbf16>
    %2 = vector.shape_cast %1 : vector<1x36x64xbf16> to vector<36x64xbf16>
    %cst = arith.constant dense<0.000000e+00> : vector<4x64xf32>
    %3 = tpu.matmul %0, %2, %cst {dimension_numbers = #tpu.dot_dimension_numbers<[1], [0], [0], [1], [0, 0, 1, 1], [], []>} : vector<4x36xbf16>, vector<36x64xbf16>, vector<4x64xf32> -> vector<4x64xf32>
    %c0_4 = arith.constant 0 : index
    %c0_5 = arith.constant 0 : index
    %4 = vector.load %arg4[%c0_4, %c0_5] : memref<4x64xf32, #tpu.memory_space<vmem>>, vector<4x64xf32>
    %5 = arith.addf %3, %4 : vector<4x64xf32>
    %c0_6 = arith.constant 0 : index
    %c0_7 = arith.constant 0 : index
    %c0_8 = arith.constant 0 : index
    %6 = vector.load %arg5[%c0_6, %c0_7, %c0_8] : memref<1x4x64xf32, #tpu.memory_space<vmem>>, vector<1x4x64xf32>
    %7 = vector.shape_cast %6 : vector<1x4x64xf32> to vector<4x64xf32>
    %8 = vector.shape_cast %5 : vector<4x64xf32> to vector<1x4x64xf32>
    tpu.vector_store %arg5[%c0_6, %c0_7, %c0_8], %8 {strides = array<i32>} : memref<1x4x64xf32, #tpu.memory_space<vmem>>, vector<1x4x64xf32>,
    return
  }
  func.func @transform_0(%arg0: i32, %arg1: i32) -> (i32, i32) {
    %c0_i32 = arith.constant 0 : i32
    %c0_i32_0 = arith.constant 0 : i32
    %c0_i32_1 = arith.constant 0 : i32
    return %c0_i32, %c0_i32_0 : i32, i32
  }
  func.func @transform_1(%arg0: i32, %arg1: i32) -> (i32, i32, i32) {
    %c0_i32 = arith.constant 0 : i32
    %c0_i32_0 = arith.constant 0 : i32
    return %arg0, %c0_i32, %arg1 : i32, i32, i32
  }
  func.func @transform_2(%arg0: i32, %arg1: i32) -> (i32, i32) {
    %c0_i32 = arith.constant 0 : i32
    %c0_i32_0 = arith.constant 0 : i32
    return %c0_i32, %arg1 : i32, i32
  }
  func.func @transform_3(%arg0: i32, %arg1: i32) -> (i32, i32, i32) {
    %c0_i32 = arith.constant 0 : i32
    %c0_i32_0 = arith.constant 0 : i32
    return %arg0, %c0_i32, %arg1 : i32, i32, i32
  }
}

</mosaic_0001>

<llo_original>
// kernel: channel_transformer_embed.1
$region0: #{channel_transformer_embed.1}
  #allocation0 [shape = 'u32[]', space=smem, size = 0x4, offset = 0x4, fixed_abs, tag = 'smem constant byte address 0x4 - core index']
  #allocation1 [shape = 'u32[144,128]{1,0:T(1,128)}', space=vmem, size = 0x12000, scoped, tag = 'internal scratch']
  %s0 = inlined_call_operand.vmem [shape: bf16[4,36], index: 0, kind: input, shape index: {}]
  %s1 = inlined_call_operand.vmem [shape: bf16[2,36,64], index: 1, kind: input, shape index: {}]
  %s2 = inlined_call_operand.vmem [shape: f32[4,64], index: 2, kind: input, shape index: {}]
  %s3 = inlined_call_operand.hbm [shape: f32[2,4,64], index: 3, kind: output, shape index: {}]
  %s4 = sld [smem:[#allocation0]]
  $region45: #{channel_transformer_embed.1} parent=0
    _
  %s6 = ssub.s32 1, %s4
  %s7 = scalar_select 0, %s6, %s4
  $region1: #{channel_transformer_embed.1} parent=0
    #allocation2 [shape = 'u8[4096]{0}', space=vmem, size = 0x1000, scoped, tag = 'output window, operand 0']
    #allocation3 [shape = 's32[2]{0}', space=sflag, size = 0x8, scoped, tag = 'scoped memory for channel_transformer_embed.1']
    %8 = vsyncpa [#allocation3], 0
    %s9 = scalar_lea.sflag [#allocation3], 1
    %10 = vsyncpa %s9, 0
    loop: start=0, step=1, limit=4
    $region2: #{channel_transformer_embed.1} parent=1 // loop_pre_header
      _
    $region3: #{channel_transformer_embed.1} parent=1 // loop_header
      %s12 = sphi 0, %s16
      %p13 = scmp.ge.s32.totalorder %s12, 4
      %s19 = sphi 0, %s31
      %s20 = sphi 0, %s27
      %s21 = sphi 0, %s19
      %s22 = sphi 0, %s20
      %s23 = sphi 0, %s21
      %s24 = sphi 0, %s22
      %s32 = sphi 0, %s32
      %s34 = sphi 0, %s32
      %s35 = sphi 0, %s34
      %s49 = sphi 0, %s35
      %s57 = sphi 0, %s59
      %s60 = sphi 0, %s57
      %s61 = sphi 0, %s60
      %s77 = sphi 0, %s61
      %s83 = sphi 0, %s85
      %s86 = sphi 0, %s83
      %s87 = sphi 0, %s86
      %s103 = sphi 0, %s87
      %s111 = sphi 0, %s113
      %s114 = sphi 0, %s111
      %s115 = sphi 0, %s114
      %s131 = sphi 0, %s115
    $region4: #{channel_transformer_embed.1} parent=1 // loop_header_branch
      %15 = sbr.rel (%p13) target = $region8
    $region5: #{channel_transformer_embed.1} parent=1 // loop_body
      %s17 = ssub.s32 %s12, 1
      %s18 = ssub.s32 %s12, 2
      %s25 = sadd.s32 1, %s20
      %p26 = scmp.ge.s32.totalorder %s25, 1
      %s27 = scalar_select %p26, 0, %s25
      %s28 = sadd.s32 1, %s19
      %s29 = scalar_select %p26, %s28, %s19
      %p30 = scmp.ge.s32.totalorder %s29, 2
      %s31 = scalar_select %p30, 0, %s29
      %s33 = sadd.s32 %s32, 1
      %p36 = scmp.eq.s32.totalorder %s12, 1
      %p37 = scmp.ne.s32.totalorder %s32, %s34
      %p38 = scmp.eq.s32.totalorder %s12, 0
      %p39 = por %p37, %p38
      %p40 = scmp.ne.s32.totalorder %s32, %s34
      %p41 = scmp.eq.s32.totalorder %s17, 1
      %p42 = por %p40, %p41
      %p43 = scmp.ne.s32.totalorder %s34, %s35
      %p44 = scmp.eq.s32.totalorder %s17, 0
      %p45 = por %p43, %p44
      %p46 = scmp.ne.s32.totalorder %s34, %s35
      %p47 = scmp.eq.s32.totalorder %s18, 1
      %p48 = por %p46, %p47
      %p50 = scmp.ne.s32.totalorder %s35, %s49
      %p51 = scmp.eq.s32.totalorder %s18, 0
      %p52 = por %p50, %p51
      %s53 = ssub.s32 %s19, %s31
      %s54 = ssub.s32 %s20, %s27
      %s55 = sor.u32 %s53, %s54
      %p56 = scmp.eq.s32.totalorder %s55, 0
      %s58 = sadd.s32 %s57, 1
      %s59 = scalar_select %p56, %s57, %s58
      %p62 = pneg %p56
      %p63 = scmp.eq.s32.totalorder %s12, 1
      %p64 = por %p62, %p63
      %p65 = scmp.ne.s32.totalorder %s57, %s60
      %p66 = scmp.eq.s32.totalorder %s12, 0
      %p67 = por %p65, %p66
      %p68 = scmp.ne.s32.totalorder %s57, %s60
      %p69 = scmp.eq.s32.totalorder %s17, 1
      %p70 = por %p68, %p69
      %p71 = scmp.ne.s32.totalorder %s60, %s61
      %p72 = scmp.eq.s32.totalorder %s17, 0
      %p73 = por %p71, %p72
      %p74 = scmp.ne.s32.totalorder %s60, %s61
      %p75 = scmp.eq.s32.totalorder %s18, 1
      %p76 = por %p74, %p75
      %p78 = scmp.ne.s32.totalorder %s61, %s77
      %p79 = scmp.eq.s32.totalorder %s18, 0
      %p80 = por %p78, %p79
      %s81 = ssub.s32 %s20, %s27
      %p82 = scmp.eq.s32.totalorder %s81, 0
      %s84 = sadd.s32 %s83, 1
      %s85 = scalar_select %p82, %s83, %s84
      %p88 = pneg %p82
      %p89 = scmp.eq.s32.totalorder %s12, 1
      %p90 = por %p88, %p89
      %p91 = scmp.ne.s32.totalorder %s83, %s86
      %p92 = scmp.eq.s32.totalorder %s12, 0
      %p93 = por %p91, %p92
      %p94 = scmp.ne.s32.totalorder %s83, %s86
      %p95 = scmp.eq.s32.totalorder %s17, 1
      %p96 = por %p94, %p95
      %p97 = scmp.ne.s32.totalorder %s86, %s87
      %p98 = scmp.eq.s32.totalorder %s17, 0
      %p99 = por %p97, %p98
      %p100 = scmp.ne.s32.totalorder %s86, %s87
      %p101 = scmp.eq.s32.totalorder %s18, 1
      %p102 = por %p100, %p101
      %p104 = scmp.ne.s32.totalorder %s87, %s103
      %p105 = scmp.eq.s32.totalorder %s18, 0
      %p106 = por %p104, %p105
      %s107 = ssub.s32 %s19, %s31
      %s108 = ssub.s32 %s20, %s27
      %s109 = sor.u32 %s107, %s108
      %p110 = scmp.eq.s32.totalorder %s109, 0
      %s112 = sadd.s32 %s111, 1
      %s113 = scalar_select %p110, %s111, %s112
      %p116 = pneg %p110
      %p117 = scmp.eq.s32.totalorder %s12, 1
      %p118 = por %p116, %p117
      %p119 = scmp.ne.s32.totalorder %s111, %s114
      %p120 = scmp.eq.s32.totalorder %s12, 0
      %p121 = por %p119, %p120
      %p122 = scmp.ne.s32.totalorder %s111, %s114
      %p123 = scmp.eq.s32.totalorder %s17, 1
      %p124 = por %p122, %p123
      %p125 = scmp.ne.s32.totalorder %s114, %s115
      %p126 = scmp.eq.s32.totalorder %s17, 0
      %p127 = por %p125, %p126
      %p128 = scmp.ne.s32.totalorder %s114, %s115
      %p129 = scmp.eq.s32.totalorder %s18, 1
      %p130 = por %p128, %p129
      %p132 = scmp.ne.s32.totalorder %s115, %s131
      %p133 = scmp.eq.s32.totalorder %s18, 0
      %p134 = por %p132, %p133
      %p135 = scmp.le.s32.totalorder 1, %s12
      %p136 = scmp.lt.s32.totalorder %s12, 3
      %p137 = pnand %p135, %p136
      %p138 = pneg %p137
      // Predicated region
      $region9: #{channel_transformer_embed.1} parent=5 // pred_check
        _
      $region10: #{channel_transformer_embed.1} parent=5 // pred_check_branch
        %140 = sbr.rel (%p137) target = $region12
      $region11: #{channel_transformer_embed.1} parent=5 // pred_region
        %s141 = ssub.s32 %s12, 1
        // Predicated region
        $region13: #{channel_transformer_embed.1} parent=11 // pred_check
          %p142 = pneg %p45
        $region14: #{channel_transformer_embed.1} parent=11 // pred_check_branch
          %144 = sbr.rel (%p142) target = $region16
        $region15: #{channel_transformer_embed.1} parent=11 // pred_region
          _
        $region16: #{channel_transformer_embed.1} parent=11 // pred_fallthru
          _
        // Predicated region
        $region17: #{channel_transformer_embed.1} parent=11 // pred_check
          %p145 = pneg %p99
        $region18: #{channel_transformer_embed.1} parent=11 // pred_check_branch
          %147 = sbr.rel (%p145) target = $region20
        $region19: #{channel_transformer_embed.1} parent=11 // pred_region
          %p148 = scmp.lt.s32.totalorder %s22, 0
          %s149 = scalar_select %p148, %s22, 0
          %s150 = smul.addr %s149, 4
          %s151 = scalar_lea.vmem %s2, %s150
        $region20: #{channel_transformer_embed.1} parent=11 // pred_fallthru
          _
      $region12: #{channel_transformer_embed.1} parent=5 // pred_fallthru
        _
      %p152 = scmp.lt.s32.totalorder %s12, 2
      // Predicated region
      $region21: #{channel_transformer_embed.1} parent=5 // pred_check
        %p153 = pneg %p152
      $region22: #{channel_transformer_embed.1} parent=5 // pred_check_branch
        %155 = sbr.rel (%p153) target = $region24
      $region23: #{channel_transformer_embed.1} parent=5 // pred_region
        // Predicated region
        $region25: #{channel_transformer_embed.1} parent=23 // pred_check
          %p156 = pneg %p67
        $region26: #{channel_transformer_embed.1} parent=23 // pred_check_branch
          %158 = sbr.rel (%p156) target = $region28
        $region27: #{channel_transformer_embed.1} parent=23 // pred_region
          %p159 = scmp.lt.s32.totalorder %s19, 1
          %s160 = scalar_select %p159, %s19, 1
          %p161 = scmp.lt.s32.totalorder %s20, 0
          %s162 = scalar_select %p161, %s20, 0
          %s163 = smul.addr %s160, 5
          %s164 = sadd.s32 %s162, %s163
          %s165 = smul.addr %s164, 4
          %s166 = scalar_lea.vmem %s1, %s165
        $region28: #{channel_transformer_embed.1} parent=23 // pred_fallthru
          _
      $region24: #{channel_transformer_embed.1} parent=5 // pred_fallthru
        _
      %p167 = scmp.le.s32.totalorder 1, %s12
      %p168 = scmp.lt.s32.totalorder %s12, 3
      %p169 = pnand %p167, %p168
      %p170 = pneg %p169
      // Predicated region
      $region29: #{channel_transformer_embed.1} parent=5 // pred_check
        _
      $region30: #{channel_transformer_embed.1} parent=5 // pred_check_branch
        %172 = sbr.rel (%p169) target = $region32
      $region31: #{channel_transformer_embed.1} parent=5 // pred_region
        %s173 = ssub.s32 %s12, 1
        %p174 = pneg %p45
        %p175 = pneg %p42
        %p176 = scmp.lt.s32.totalorder %s21, 1
        %s177 = scalar_select %p176, %s21, 1
        %p178 = scmp.lt.s32.totalorder %s22, 0
        %s179 = scalar_select %p178, %s22, 0
        %s180 = smul.addr %s177, 5
        %s181 = sadd.s32 %s179, %s180
        %s182 = smul.addr %s181, 4
        %s183 = scalar_lea.vmem %s1, %s182
        %p184 = pneg %p73
        %p185 = pneg %p70
        %p186 = scmp.lt.s32.totalorder %s22, 0
        %s187 = scalar_select %p186, %s22, 0
        %s188 = smul.addr %s187, 4
        %s189 = scalar_lea.vmem %s2, %s188
        %p190 = pneg %p99
        %p191 = pneg %p96
        %p192 = pneg %p127
        %p193 = pneg %p124
        %s194 = sand.u32 %s114, 1
        %s195 = scalar_lea.sflag [#allocation3], %s194
        %s196 = sand.u32 %s114, 1
        %s197 = smul.addr %s196, 4
        %s198 = scalar_lea.vmem [#allocation2], %s197
        %p199 = scmp.lt.s32.totalorder %s21, 1
        %s200 = scalar_select %p199, %s21, 1
        %p201 = scmp.lt.s32.totalorder %s22, 0
        %s202 = scalar_select %p201, %s22, 0
        %s203 = smul.addr %s200, 5
        %s204 = sadd.s32 %s202, %s203
        %s205 = smul.addr %s204, 4
        %s206 = scalar_lea.vmem %s1, %s205
        %p207 = scmp.lt.s32.totalorder %s22, 0
        %s208 = scalar_select %p207, %s22, 0
        %s209 = smul.addr %s208, 4
        %s210 = scalar_lea.vmem %s2, %s209
        %v212 = vld [vmem:[%s0] sm:$0x3]
        %v213 = vld [vmem:[%s206] sm:$0xf]
        %v214 = vld [vmem:[%s206 + $0x4] sm:$0xf]
        %v215 = vld [vmem:[%s206 + $0x8] sm:$0xf]
        %v216 = vld [vmem:[%s206 + $0xc] sm:$0xf]
        %v217 = vld [vmem:[%s206 + $0x10] sm:$0x3]
        %v218 = vld [vmem:[%s210] sm:$0xf]
        %v224 = vunpack.c.l.b16 %v213
        %v225 = vunpack.c.l.b16 %v214
        %v226 = vunpack.c.l.b16 %v215
        %v227 = vunpack.c.l.b16 %v216
        %v228 = vunpack.c.l.b16 %v217
        %v229 = vpack.c.b16 %v225, %v224
        %v230 = vpack.c.b16 %v227, %v226
        %v231 = vpack.c.b16 %v228, %v228
        %vm234 = vcmask 293888
        %v236 = vsel %vm234, %v212, 0
        %vm238 = vcmask 1041408
        %v240 = vsel %vm238, %v231, 0
        %242 = vmatprep.subr.bf16.mxu0 0
        %243 = vmatpush1.bf16.msra.mxu0 %v229
        %244 = vmatprep.subr.bf16.mxu0 0
        %245 = vmatpush1.bf16.msra.mxu0 %v230
        %246 = vmatprep.subr.bf16.mxu0 0
        %247 = vmatpush1.bf16.msra.mxu0 %v240
        %248 = vmatprep.subr.bf16.mxu0 0
        %249 = vmatpush1.bf16.msra.mxu0 0
        %250 = vmatprep.subr.bf16.mxu0 0
        %251 = vmatpush1.bf16.msra.mxu0 0
        %252 = vmatprep.subr.bf16.mxu0 0
        %253 = vmatpush1.bf16.msra.mxu0 0
        %254 = vmatprep.subr.bf16.mxu0 0
        %255 = vmatpush1.bf16.msra.mxu0 0
        %256 = vmatprep.subr.bf16.mxu0 0
        %257 = vmatpush1.bf16.msra.mxu0 0
        %258 = vmatprep.subr.bf16.mxu0 0
        %259 = vmatpush1.bf16.msra.mxu0 0
        %260 = vmatprep.subr.bf16.mxu0 0
        %261 = vmatpush1.bf16.msra.mxu0 0
        %262 = vmatprep.subr.bf16.mxu0 0
        %263 = vmatpush1.bf16.msra.mxu0 0
        %264 = vmatprep.subr.bf16.mxu0 0
        %265 = vmatpush1.bf16.msra.mxu0 0
        %266 = vmatprep.subr.bf16.mxu0 0
        %267 = vmatpush1.bf16.msra.mxu0 0
        %268 = vmatprep.subr.bf16.mxu0 0
        %269 = vmatpush1.bf16.msra.mxu0 0
        %270 = vmatprep.subr.bf16.mxu0 0
        %271 = vmatpush1.bf16.msra.mxu0 0
        %272 = vmatprep.subr.bf16.mxu0 0
        %273 = vmatpush1.bf16.msra.mxu0 0
        %274 = vmatprep.mubr.bf16.mxu0 0
        %275 = vmatmul.mubr.bf16.gmra.mrb[0].mxu0 %v236
        %v276 = vpop.f32.mrb[0].mxu0
        %v277 = vadd.f32 %v218, %v276
        %v278 = vpop.f32.mrb[0].mxu0
        %v279 = vpop.f32.mrb[0].mxu0
        %v280 = vpop.f32.mrb[0].mxu0
        %281 = vdwg.mxu0
        %vm282 = vcmask 519168
        %283 = vst.msk [vmem:[%s198] sm:$0xf] %vm282, %v277
        %s284 = sand.u32 %s114, 1
        %s285 = scalar_lea.sflag [#allocation3], %s284
        %s286 = sand.u32 %s114, 1
        %s287 = smul.addr %s286, 4
        %s288 = scalar_lea.vmem [#allocation2], %s287
        // Predicated region
        $region33: #{channel_transformer_embed.1} parent=31 // pred_check
          %p289 = pneg %p124
        $region34: #{channel_transformer_embed.1} parent=31 // pred_check_branch
          %291 = sbr.rel (%p289) target = $region36
        $region35: #{channel_transformer_embed.1} parent=31 // pred_region
          %s293 = ssub.s32 64, 64
          %294 = vsyncadd %s285, %s293
          %s295 = sadd.s32 %s22, %s21
          %s296 = smul.addr %s295, 64
          %s297 = scalar_lea.hbm %s3, %s296
          %s299 = sshll.u32 %s288, 4
          %s300 = int_to_ptr.vmem [resolvable:$true] %s299
          %302 = dma.vmem_to_hbm [thread:$0]  %s300, 64, %s297, %s285
        $region36: #{channel_transformer_embed.1} parent=31 // pred_fallthru
          _
      $region32: #{channel_transformer_embed.1} parent=5 // pred_fallthru
        _
      %p303 = scmp.le.s32.totalorder 2, %s12
      // Predicated region
      $region37: #{channel_transformer_embed.1} parent=5 // pred_check
        %p304 = pneg %p303
      $region38: #{channel_transformer_embed.1} parent=5 // pred_check_branch
        %306 = sbr.rel (%p304) target = $region40
      $region39: #{channel_transformer_embed.1} parent=5 // pred_region
        %s307 = ssub.s32 %s12, 2
        // Predicated region
        $region41: #{channel_transformer_embed.1} parent=39 // pred_check
          %p308 = pneg %p130
        $region42: #{channel_transformer_embed.1} parent=39 // pred_check_branch
          %310 = sbr.rel (%p308) target = $region44
        $region43: #{channel_transformer_embed.1} parent=39 // pred_region
          %s311 = sand.u32 %s115, 1
          %s312 = scalar_lea.sflag [#allocation3], %s311
          %s313 = sand.u32 %s115, 1
          %s314 = smul.addr %s313, 4
          %s315 = scalar_lea.vmem [#allocation2], %s314
          %316 = dma.done %s312, 64
        $region44: #{channel_transformer_embed.1} parent=39 // pred_fallthru
          _
      $region40: #{channel_transformer_embed.1} parent=5 // pred_fallthru
        _
    $region6: #{channel_transformer_embed.1} parent=1 // loop_footer
      %s16 = sadd.s32 1, %s12
    $region7: #{channel_transformer_embed.1} parent=1 // loop_footer_branch
      %11 = sbr.rel target = $region3
    $region8: #{channel_transformer_embed.1} parent=1 // loop_exit
      _
    %317 = vsyncpa [#allocation3], 1
    %s318 = scalar_lea.sflag [#allocation3], 1
    %319 = vsyncpa %s318, 1

</llo_original>
